<compile_context>
chip_gen: v6e
topology: v6e:2x2x1
jax: 0.10.0
libtpu: 0.0.40
codegen_flags: <defaults>
</compile_context>

<pallas_src>
import jax
import jax.numpy as jnp
from jax.experimental import pallas as pl
from jax.experimental.pallas import tpu as pltpu

LANES = 128


def _linreg_kernel(w_ref, x_ref, o_ref):
    # w_ref: (1, 1) scalar weight in SMEM; x_ref/o_ref: (tm, 128) lane-dense VMEM tiles.
    # y = x @ W^T with a 1x1 weight is an elementwise scale -> one VPU broadcast-multiply.
    o_ref[...] = x_ref[...] * w_ref[0, 0]


def _round_up(v, mult):
    return ((v + mult - 1) // mult) * mult


def _scale_2d(x2d, weight, tm):
    """Scale an (m, 128) slab by the scalar weight with a tiled, pipelined grid."""
    m = x2d.shape[0]
    return pl.pallas_call(
        _linreg_kernel,
        out_shape=jax.ShapeDtypeStruct(x2d.shape, x2d.dtype),
        grid_spec=pl.GridSpec(
            grid=(pl.cdiv(m, tm),),
            in_specs=[
                pl.BlockSpec(memory_space=pltpu.MemorySpace.SMEM),  # weight (1, 1)
                pl.BlockSpec((tm, LANES), lambda i: (i, 0)),        # x row-tile
            ],
            out_specs=pl.BlockSpec((tm, LANES), lambda i: (i, 0)),
        ),
        compiler_params=pltpu.CompilerParams(
            dimension_semantics=("parallel",),  # v7x: shard row tiles across both TCs
        ),
    )(weight, x2d)


def linear_regression_forward(x, weight, *, tile_rows=4096):
    """x: (N, 1) float32, weight: (1, 1) float32 -> (N, 1) float32 (== x @ weight.T)."""
    n, f = x.shape
    assert f == 1 and weight.shape == (1, 1)

    # Lane-dense view of the N scalars as an (m, 128) slab.
    m = pl.cdiv(n, LANES)

    # Tile rows: sanitize requested size to a multiple of 8 sublanes, and cap so that
    # large inputs produce >= ~4 grid steps (load-balances v7x's 2 TensorCores; no-op
    # on v5e/v6e).  tile_rows=4096 -> 2 MiB tile; double-buffered in+out = 8 MiB VMEM.
    tm_req = max(8, (tile_rows // 8) * 8)
    tm_cap = max(8, _round_up(pl.cdiv(m, 4), 8))
    tm = min(tm_req, tm_cap)
    if tm >= m:
        tm = m  # single full-extent block (always legal, regardless of 8-divisibility)

    if n % LANES == 0:
        # Fast path: zero host-side pad/slice copies (reshapes of contiguous data are free).
        out2d = _scale_2d(x.reshape(m, LANES), weight, tm)
        return out2d.reshape(n, 1)

    # Ragged path: pad only to the next multiple of 128; partial last row-tile (if any)
    # is handled by the cdiv grid.  Zero padding is exact for y = x*w and trimmed after.
    x_flat = x.reshape(-1)
    x_flat = jnp.pad(x_flat, (0, m * LANES - n))
    out2d = _scale_2d(x_flat.reshape(m, LANES), weight, tm)
    return out2d.reshape(-1)[:n].reshape(n, 1)


if __name__ == "__main__":
    key = jax.random.PRNGKey(0)
    k_w, k_x1, k_x2, k_x3 = jax.random.split(key, 4)

    # torch.nn.Linear(1, 1, bias=False): weight shape (out_features=1, in_features=1),
    # init uniform(-1/sqrt(in_features), 1/sqrt(in_features)) = uniform(-1, 1).
    weight = jax.random.uniform(k_w, (1, 1), jnp.float32, minval=-1.0, maxval=1.0)

    # Small batch of scalar inputs consistent with the module: (8, 1) -> ragged, single block.
    x_small = jax.random.normal(k_x1, (8, 1), jnp.float32)
    out_small = jax.block_until_ready(linear_regression_forward(x_small, weight))
    assert out_small.shape == (8, 1)
    assert jnp.allclose(out_small, x_small @ weight.T, atol=1e-6), "mismatch (small)"

    # 128-aligned size -> fast path, no pad/slice copies, multi-tile grid with a
    # partial last row-tile (40 rows, tm=16 -> grid of 3).
    x_aligned = jax.random.normal(k_x2, (5120, 1), jnp.float32)
    out_aligned = jax.block_until_ready(
        linear_regression_forward(x_aligned, weight, tile_rows=16)
    )
    assert out_aligned.shape == (5120, 1)
    assert jnp.allclose(out_aligned, x_aligned @ weight.T, atol=1e-6), "mismatch (aligned)"

    # Ragged size -> minimal pad to next 128 multiple + multi-tile pipelined grid.
    x_ragged = jax.random.normal(k_x3, (3000, 1), jnp.float32)
    out_ragged = jax.block_until_ready(
        linear_regression_forward(x_ragged, weight, tile_rows=8)
    )
    assert out_ragged.shape == (3000, 1)
    assert jnp.allclose(out_ragged, x_ragged @ weight.T, atol=1e-6), "mismatch (ragged)"

    print("KERNEL_OK")
</pallas_src>

<mosaic_0001>
module attributes {stable_mosaic.version = 11 : i64} {
  func.func @_linreg_kernel(%arg0: i32, %arg1: memref<1x1xf32, #tpu.memory_space<smem>>, %arg2: memref<1x128xf32, #tpu.memory_space<vmem>>, %arg3: memref<1x128xf32, #tpu.memory_space<vmem>>) attributes {dimension_semantics = [#tpu.dimension_semantics<parallel>], iteration_bounds = array<i64: 1>, scalar_prefetch = 0 : i64, scratch_operands = 0 : i64, tpu.core_type = #tpu.core_type<tc>, window_params = [{transform_indices = @transform_0, window_bounds = array<i64: 1, 1>}, {transform_indices = @transform_1, window_bounds = array<i64: 1, 128>}, {transform_indices = @transform_2, window_bounds = array<i64: 1, 128>}]} {
    %c0 = arith.constant 0 : index
    %c0_0 = arith.constant 0 : index
    %0 = vector.load %arg2[%c0, %c0_0] : memref<1x128xf32, #tpu.memory_space<vmem>>, vector<1x128xf32>
    %c0_1 = arith.constant 0 : index
    %c0_2 = arith.constant 0 : index
    %1 = memref.load %arg1[%c0_1, %c0_2] : memref<1x1xf32, #tpu.memory_space<smem>>
    %2 = vector.broadcast %1 : f32 to vector<1x128xf32>
    %3 = arith.mulf %0, %2 : vector<1x128xf32>
    %c0_3 = arith.constant 0 : index
    %c0_4 = arith.constant 0 : index
    %4 = vector.load %arg3[%c0_3, %c0_4] : memref<1x128xf32, #tpu.memory_space<vmem>>, vector<1x128xf32>
    tpu.vector_store %arg3[%c0_3, %c0_4], %3 {strides = array<i32>} : memref<1x128xf32, #tpu.memory_space<vmem>>, vector<1x128xf32>,
    return
  }
  func.func @transform_0(%arg0: i32) -> (i32, i32) {
    %c0_i32 = arith.constant 0 : i32
    %c0_i32_0 = arith.constant 0 : i32
    %c0_i32_1 = arith.constant 0 : i32
    return %c0_i32, %c0_i32_0 : i32, i32
  }
  func.func @transform_1(%arg0: i32) -> (i32, i32) {
    %c0_i32 = arith.constant 0 : i32
    %c0_i32_0 = arith.constant 0 : i32
    return %arg0, %c0_i32 : i32, i32
  }
  func.func @transform_2(%arg0: i32) -> (i32, i32) {
    %c0_i32 = arith.constant 0 : i32
    %c0_i32_0 = arith.constant 0 : i32
    return %arg0, %c0_i32 : i32, i32
  }
}

</mosaic_0001>

<llo_original>
// kernel: tpu_custom_call.1
$region0: #{tpu_custom_call.1}
  #allocation0 [shape = 'u32[]', space=smem, size = 0x4, offset = 0x4, fixed_abs, tag = 'smem constant byte address 0x4 - core index']
  #allocation1 [shape = 'u32[144,128]{1,0:T(1,128)}', space=vmem, size = 0x12000, scoped, tag = 'internal scratch']
  #allocation2 [shape = 'f32[1,1]{1,0:T(1,128)S(6)}', space=smem, size = 0x200, scoped, tag = 'scoped memory for tpu_custom_call.1']
  %s0 = inlined_call_operand.<no memory space> [shape: f32[1,1], index: 0, kind: input, shape index: {}]
  %s1 = inlined_call_operand.vmem [shape: f32[1,128], index: 1, kind: input, shape index: {}]
  %s2 = inlined_call_operand.hbm [shape: f32[1,128], index: 2, kind: output, shape index: {}]
  %s3 = sld [smem:[#allocation0]]
  $region18: #{tpu_custom_call.1} parent=0
    _
  %s5 = ssub.s32 1, %s3
  %s6 = scalar_select 0, %s5, %s3
  %7 = sst [smem:[#allocation2]] %s0
  $region1: #{tpu_custom_call.1} parent=0
    #allocation3 [shape = 'u8[512]{0}', space=vmem, size = 0x400, scoped, tag = 'output window, operand 0, single buffered']
    #allocation4 [shape = 's32[1]{0}', space=sflag, size = 0x4, scoped, tag = 'scoped memory for tpu_custom_call.1']
    %8 = vsyncpa [#allocation4], 0
    // Predicated region
    $region2: #{tpu_custom_call.1} parent=1 // pred_check
      _
    $region3: #{tpu_custom_call.1} parent=1 // pred_check_branch
      %10 = sbr.rel (0) target = $region5
    $region4: #{tpu_custom_call.1} parent=1 // pred_region
      _
    $region5: #{tpu_custom_call.1} parent=1 // pred_fallthru
      _
    // Predicated region
    $region6: #{tpu_custom_call.1} parent=1 // pred_check
      _
    $region7: #{tpu_custom_call.1} parent=1 // pred_check_branch
      %12 = sbr.rel (0) target = $region9
    $region8: #{tpu_custom_call.1} parent=1 // pred_region
      _
    $region9: #{tpu_custom_call.1} parent=1 // pred_fallthru
      _
    %v13 = vld [vmem:[%s1] sm:$0x1]
    %s14 = sld [smem:[#allocation2]]
    %v15 = vstv %s14
    %v16 = vmul.f32 %v13, %v15
    %17 = vst [vmem:[#allocation3] sm:$0x1] %v16
    // Predicated region
    $region10: #{tpu_custom_call.1} parent=1 // pred_check
      _
    $region11: #{tpu_custom_call.1} parent=1 // pred_check_branch
      %19 = sbr.rel (0) target = $region13
    $region12: #{tpu_custom_call.1} parent=1 // pred_region
      %s21 = ssub.s32 16, 16
      %22 = vsyncadd [#allocation4], %s21
      %s24 = sshll.u32 [#allocation3], 4
      %s25 = int_to_ptr.vmem [resolvable:$true] %s24
      %27 = dma.vmem_to_hbm [thread:$0]  %s25, 16, %s2, [#allocation4]
    $region13: #{tpu_custom_call.1} parent=1 // pred_fallthru
      _
    // Predicated region
    $region14: #{tpu_custom_call.1} parent=1 // pred_check
      _
    $region15: #{tpu_custom_call.1} parent=1 // pred_check_branch
      %29 = sbr.rel (0) target = $region17
    $region16: #{tpu_custom_call.1} parent=1 // pred_region
      %30 = dma.done [#allocation4], 16
    $region17: #{tpu_custom_call.1} parent=1 // pred_fallthru
      _
    %31 = vsyncpa [#allocation4], 1

</llo_original>
